<compile_context>
chip_gen: v7x
topology: tpu7x:2x2x1
jax: 0.10.0
libtpu: 0.0.40
codegen_flags: <defaults>
</compile_context>

<pallas_src>
import functools

import jax
import jax.numpy as jnp
from jax.experimental import pallas as pl
from jax.experimental.pallas import tpu as pltpu


def _lstm_kernel(x_ref, p_ref, out_ref, *, seq_len, batch, hidden_size, input_size):
    T, B, H, D = seq_len, batch, hidden_size, input_size

    # ---- Unpack the consolidated parameter tile (one load, static slices) -------
    params = p_ref[...]                                   # (40, 4H) f32
    w_hh = params[0:H, :]                                 # (H, 4H)
    w_ih = params[H:H + D, :]                             # (D, 4H)
    b = params[H + D:H + D + 1, :]                        # (1, 4H)  (= b_ih + b_hh)
    w_lin = params[H + D + 1:H + D + 2, 0:H]              # (1, H)
    b_lin = params[H + D + 2:H + D + 3, 0:1]              # (1, 1)

    # ---- Hoisted input projection (no time dependence, off the serial path) -----
    # ONE (T*B, D) @ (D, 4H) matmul + ONE bias broadcast, kept live in vregs.
    gx = jnp.dot(x_ref[...], w_ih, preferred_element_type=jnp.float32) + b   # (T*B, 4H)

    # bf16 operands for the recurrent matmul (MXU-native); f32 accumulation.
    w_hh_bf = w_hh.astype(jnp.bfloat16)

    # ---- Serial recurrence: only h @ W_hh + elementwise on the critical path ----
    # Fully unrolled static Python loop (T=8) so every gx slice is a static,
    # sublane-aligned 8-row slice of a live value.
    h = jnp.zeros((B, H), jnp.float32)
    c = jnp.zeros((B, H), jnp.float32)
    for t in range(T):
        gates = gx[t * B:(t + 1) * B, :] + jnp.dot(
            h.astype(jnp.bfloat16), w_hh_bf, preferred_element_type=jnp.float32)  # (B, 4H)

        # Full-width EUP transcendentals on the single (B, 128-lane) row,
        # then static per-gate slices of the activated results (f32 throughout).
        sig = jax.nn.sigmoid(gates)
        tnh = jnp.tanh(gates)
        i_g = sig[:, 0 * H:1 * H]
        f_g = sig[:, 1 * H:2 * H]
        g_g = tnh[:, 2 * H:3 * H]
        o_g = sig[:, 3 * H:4 * H]

        c = f_g * c + i_g * g_g
        h = o_g * jnp.tanh(c)

    # ---- Final Linear (H -> 1): VPU mul + lane reduction (no N=1 MXU matmul) ----
    out_ref[...] = jnp.sum(h * w_lin, axis=-1, keepdims=True) + b_lin          # (B, 1)


def lstm_model_forward(x, w_ih, w_hh, b_ih, b_hh, w_lin, b_lin):
    """x: (B, T, D) batch_first, like the PyTorch module. Returns (B,)."""
    B, T, D = x.shape
    H = w_hh.shape[1]
    assert w_ih.shape == (4 * H, D)
    assert w_lin.shape == (1, H)

    # Pad batch to a full sublane group so all in-kernel row slices are aligned.
    B_pad = max(8, ((B + 7) // 8) * 8)

    # Time-major, batch-padded, flattened input: (T * B_pad, D).
    x_tm = jnp.transpose(x, (1, 0, 2)).astype(jnp.float32)            # (T, B, D)
    x_tm = jnp.pad(x_tm, ((0, 0), (0, B_pad - B), (0, 0)))            # (T, B_pad, D)
    x_2d = x_tm.reshape(T * B_pad, D)

    # Consolidated parameter tile: rows [0:H)=W_hh^T, [H:H+D)=W_ih^T,
    # [H+D]=b_ih+b_hh, [H+D+1]=W_lin (lanes 0:H), [H+D+2]=b_lin (lane 0).
    n_rows = H + D + 3
    p_rows = ((n_rows + 7) // 8) * 8                                   # pad to sublane multiple
    params = jnp.zeros((p_rows, 4 * H), jnp.float32)
    params = params.at[0:H, :].set(w_hh.T.astype(jnp.float32))
    params = params.at[H:H + D, :].set(w_ih.T.astype(jnp.float32))
    params = params.at[H + D, :].set((b_ih + b_hh).astype(jnp.float32))
    params = params.at[H + D + 1, 0:H].set(w_lin.reshape(H).astype(jnp.float32))
    params = params.at[H + D + 2, 0].set(b_lin.reshape(()).astype(jnp.float32))

    kernel = functools.partial(_lstm_kernel, seq_len=T, batch=B_pad,
                               hidden_size=H, input_size=D)

    out = pl.pallas_call(
        kernel,
        out_shape=jax.ShapeDtypeStruct((B_pad, 1), jnp.float32),
        grid=(1,),
        in_specs=[
            pl.BlockSpec((T * B_pad, D), lambda i: (0, 0)),            # x (time-major, flat)
            pl.BlockSpec((p_rows, 4 * H), lambda i: (0, 0)),           # packed parameters
        ],
        out_specs=pl.BlockSpec((B_pad, 1), lambda i: (0, 0)),
        compiler_params=pltpu.CompilerParams(
            dimension_semantics=("arbitrary",),                        # single step, single core
        ),
    )(x_2d, params)

    return out[:B, 0]   # drop batch padding, squeeze(-1) -> (B,)


def _reference_forward(x, w_ih, w_hh, b_ih, b_hh, w_lin, b_lin):
    """Pure-JAX reference matching PyTorch nn.LSTM + nn.Linear semantics."""
    B, T, D = x.shape
    H = w_hh.shape[1]

    def step(carry, x_t):
        h, c = carry
        gates = x_t @ w_ih.T + b_ih + h @ w_hh.T + b_hh
        i = jax.nn.sigmoid(gates[:, 0 * H:1 * H])
        f = jax.nn.sigmoid(gates[:, 1 * H:2 * H])
        g = jnp.tanh(gates[:, 2 * H:3 * H])
        o = jax.nn.sigmoid(gates[:, 3 * H:4 * H])
        c = f * c + i * g
        h = o * jnp.tanh(c)
        return (h, c), None

    h0 = jnp.zeros((B, H), jnp.float32)
    c0 = jnp.zeros((B, H), jnp.float32)
    (h_last, _), _ = jax.lax.scan(step, (h0, c0), jnp.transpose(x, (1, 0, 2)))
    return (h_last @ w_lin.T + b_lin)[:, 0]


if __name__ == "__main__":
    # Small shapes consistent with the module: batch=2, seq=8, input=4, hidden=32
    B, T, D, H = 2, 8, 4, 32

    key = jax.random.PRNGKey(0)
    ks = jax.random.split(key, 7)
    bound = 1.0 / jnp.sqrt(H)  # PyTorch default init range U(-1/sqrt(H), 1/sqrt(H))

    x = jax.random.normal(ks[0], (B, T, D), jnp.float32)
    w_ih = jax.random.uniform(ks[1], (4 * H, D), jnp.float32, -bound, bound)
    w_hh = jax.random.uniform(ks[2], (4 * H, H), jnp.float32, -bound, bound)
    b_ih = jax.random.uniform(ks[3], (4 * H,), jnp.float32, -bound, bound)
    b_hh = jax.random.uniform(ks[4], (4 * H,), jnp.float32, -bound, bound)
    w_lin = jax.random.uniform(ks[5], (1, H), jnp.float32, -bound, bound)
    b_lin = jax.random.uniform(ks[6], (1,), jnp.float32, -bound, bound)

    y = lstm_model_forward(x, w_ih, w_hh, b_ih, b_hh, w_lin, b_lin)
    y = jax.block_until_ready(y)

    y_ref = _reference_forward(x, w_ih, w_hh, b_ih, b_hh, w_lin, b_lin)
    assert y.shape == (B,)
    assert jnp.allclose(y, y_ref, rtol=2e-2, atol=2e-2), (y, y_ref)

    print("KERNEL_OK")
</pallas_src>

<mosaic_0001>
module attributes {stable_mosaic.version = 11 : i64} {
  func.func @_lstm_kernel(%arg0: i32, %arg1: memref<64x4xf32, #tpu.memory_space<vmem>>, %arg2: memref<40x128xf32, #tpu.memory_space<vmem>>, %arg3: memref<8x1xf32, #tpu.memory_space<vmem>>) attributes {dimension_semantics = [#tpu.dimension_semantics<arbitrary>], iteration_bounds = array<i64: 1>, scalar_prefetch = 0 : i64, scratch_operands = 0 : i64, tpu.core_type = #tpu.core_type<tc>, window_params = [{pipeline_mode = #tpu.pipeline_mode<synchronous>, transform_indices = @transform_0, window_bounds = array<i64: 64, 4>}, {pipeline_mode = #tpu.pipeline_mode<synchronous>, transform_indices = @transform_1, window_bounds = array<i64: 40, 128>}, {pipeline_mode = #tpu.pipeline_mode<synchronous>, transform_indices = @transform_2, window_bounds = array<i64: 8, 1>}]} {
    %c0 = arith.constant 0 : index
    %c0_0 = arith.constant 0 : index
    %0 = vector.load %arg2[%c0, %c0_0] : memref<40x128xf32, #tpu.memory_space<vmem>>, vector<40x128xf32>
    %1 = vector.extract_strided_slice %0 {offsets = [0, 0], sizes = [32, 128], strides = [1, 1]} : vector<40x128xf32> to vector<32x128xf32>
    %2 = vector.extract_strided_slice %0 {offsets = [32, 0], sizes = [4, 128], strides = [1, 1]} : vector<40x128xf32> to vector<4x128xf32>
    %3 = vector.extract_strided_slice %0 {offsets = [36, 0], sizes = [1, 128], strides = [1, 1]} : vector<40x128xf32> to vector<1x128xf32>
    %4 = vector.extract_strided_slice %0 {offsets = [37, 0], sizes = [1, 32], strides = [1, 1]} : vector<40x128xf32> to vector<1x32xf32>
    %5 = vector.extract_strided_slice %0 {offsets = [38, 0], sizes = [1, 1], strides = [1, 1]} : vector<40x128xf32> to vector<1x1xf32>
    %c0_1 = arith.constant 0 : index
    %c0_2 = arith.constant 0 : index
    %6 = vector.load %arg1[%c0_1, %c0_2] : memref<64x4xf32, #tpu.memory_space<vmem>>, vector<64x4xf32>
    %cst = arith.constant dense<0.000000e+00> : vector<64x128xf32>
    %7 = tpu.matmul %6, %2, %cst {dimension_numbers = #tpu.dot_dimension_numbers<[1], [0], [0], [1], [0, 0, 1, 1], [], []>} : vector<64x4xf32>, vector<4x128xf32>, vector<64x128xf32> -> vector<64x128xf32>
    %8 = vector.broadcast %3 : vector<1x128xf32> to vector<64x128xf32>
    %9 = arith.addf %7, %8 : vector<64x128xf32>
    %10 = arith.truncf %1 : vector<32x128xf32> to vector<32x128xbf16>
    %cst_3 = arith.constant 0.000000e+00 : f32
    %11 = vector.broadcast %cst_3 : f32 to vector<8x32xf32>
    %cst_4 = arith.constant 0.000000e+00 : f32
    %12 = vector.broadcast %cst_4 : f32 to vector<8x32xf32>
    %13 = vector.extract_strided_slice %9 {offsets = [0, 0], sizes = [8, 128], strides = [1, 1]} : vector<64x128xf32> to vector<8x128xf32>
    %14 = arith.truncf %11 : vector<8x32xf32> to vector<8x32xbf16>
    %cst_5 = arith.constant dense<0.000000e+00> : vector<8x128xf32>
    %15 = tpu.matmul %14, %10, %cst_5 {dimension_numbers = #tpu.dot_dimension_numbers<[1], [0], [0], [1], [0, 0, 1, 1], [], []>} : vector<8x32xbf16>, vector<32x128xbf16>, vector<8x128xf32> -> vector<8x128xf32>
    %16 = arith.addf %13, %15 : vector<8x128xf32>
    %17 = arith.negf %16 : vector<8x128xf32>
    %18 = math.exp %17 : vector<8x128xf32>
    %cst_6 = arith.constant 1.000000e+00 : f32
    %19 = vector.broadcast %cst_6 : f32 to vector<8x128xf32>
    %20 = arith.addf %19, %18 : vector<8x128xf32>
    %21 = arith.divf %19, %20 : vector<8x128xf32>
    %22 = math.tanh %16 : vector<8x128xf32>
    %23 = vector.extract_strided_slice %21 {offsets = [0, 0], sizes = [8, 32], strides = [1, 1]} : vector<8x128xf32> to vector<8x32xf32>
    %24 = vector.extract_strided_slice %21 {offsets = [0, 32], sizes = [8, 32], strides = [1, 1]} : vector<8x128xf32> to vector<8x32xf32>
    %25 = vector.extract_strided_slice %22 {offsets = [0, 64], sizes = [8, 32], strides = [1, 1]} : vector<8x128xf32> to vector<8x32xf32>
    %26 = vector.extract_strided_slice %21 {offsets = [0, 96], sizes = [8, 32], strides = [1, 1]} : vector<8x128xf32> to vector<8x32xf32>
    %27 = arith.mulf %24, %12 : vector<8x32xf32>
    %28 = arith.mulf %23, %25 : vector<8x32xf32>
    %29 = arith.addf %27, %28 : vector<8x32xf32>
    %30 = math.tanh %29 : vector<8x32xf32>
    %31 = arith.mulf %26, %30 : vector<8x32xf32>
    %32 = vector.extract_strided_slice %9 {offsets = [8, 0], sizes = [8, 128], strides = [1, 1]} : vector<64x128xf32> to vector<8x128xf32>
    %33 = arith.truncf %31 : vector<8x32xf32> to vector<8x32xbf16>
    %cst_7 = arith.constant dense<0.000000e+00> : vector<8x128xf32>
    %34 = tpu.matmul %33, %10, %cst_7 {dimension_numbers = #tpu.dot_dimension_numbers<[1], [0], [0], [1], [0, 0, 1, 1], [], []>} : vector<8x32xbf16>, vector<32x128xbf16>, vector<8x128xf32> -> vector<8x128xf32>
    %35 = arith.addf %32, %34 : vector<8x128xf32>
    %36 = arith.negf %35 : vector<8x128xf32>
    %37 = math.exp %36 : vector<8x128xf32>
    %cst_8 = arith.constant 1.000000e+00 : f32
    %38 = vector.broadcast %cst_8 : f32 to vector<8x128xf32>
    %39 = arith.addf %38, %37 : vector<8x128xf32>
    %40 = arith.divf %38, %39 : vector<8x128xf32>
    %41 = math.tanh %35 : vector<8x128xf32>
    %42 = vector.extract_strided_slice %40 {offsets = [0, 0], sizes = [8, 32], strides = [1, 1]} : vector<8x128xf32> to vector<8x32xf32>
    %43 = vector.extract_strided_slice %40 {offsets = [0, 32], sizes = [8, 32], strides = [1, 1]} : vector<8x128xf32> to vector<8x32xf32>
    %44 = vector.extract_strided_slice %41 {offsets = [0, 64], sizes = [8, 32], strides = [1, 1]} : vector<8x128xf32> to vector<8x32xf32>
    %45 = vector.extract_strided_slice %40 {offsets = [0, 96], sizes = [8, 32], strides = [1, 1]} : vector<8x128xf32> to vector<8x32xf32>
    %46 = arith.mulf %43, %29 : vector<8x32xf32>
    %47 = arith.mulf %42, %44 : vector<8x32xf32>
    %48 = arith.addf %46, %47 : vector<8x32xf32>
    %49 = math.tanh %48 : vector<8x32xf32>
    %50 = arith.mulf %45, %49 : vector<8x32xf32>
    %51 = vector.extract_strided_slice %9 {offsets = [16, 0], sizes = [8, 128], strides = [1, 1]} : vector<64x128xf32> to vector<8x128xf32>
    %52 = arith.truncf %50 : vector<8x32xf32> to vector<8x32xbf16>
    %cst_9 = arith.constant dense<0.000000e+00> : vector<8x128xf32>
    %53 = tpu.matmul %52, %10, %cst_9 {dimension_numbers = #tpu.dot_dimension_numbers<[1], [0], [0], [1], [0, 0, 1, 1], [], []>} : vector<8x32xbf16>, vector<32x128xbf16>, vector<8x128xf32> -> vector<8x128xf32>
    %54 = arith.addf %51, %53 : vector<8x128xf32>
    %55 = arith.negf %54 : vector<8x128xf32>
    %56 = math.exp %55 : vector<8x128xf32>
    %cst_10 = arith.constant 1.000000e+00 : f32
    %57 = vector.broadcast %cst_10 : f32 to vector<8x128xf32>
    %58 = arith.addf %57, %56 : vector<8x128xf32>
    %59 = arith.divf %57, %58 : vector<8x128xf32>
    %60 = math.tanh %54 : vector<8x128xf32>
    %61 = vector.extract_strided_slice %59 {offsets = [0, 0], sizes = [8, 32], strides = [1, 1]} : vector<8x128xf32> to vector<8x32xf32>
    %62 = vector.extract_strided_slice %59 {offsets = [0, 32], sizes = [8, 32], strides = [1, 1]} : vector<8x128xf32> to vector<8x32xf32>
    %63 = vector.extract_strided_slice %60 {offsets = [0, 64], sizes = [8, 32], strides = [1, 1]} : vector<8x128xf32> to vector<8x32xf32>
    %64 = vector.extract_strided_slice %59 {offsets = [0, 96], sizes = [8, 32], strides = [1, 1]} : vector<8x128xf32> to vector<8x32xf32>
    %65 = arith.mulf %62, %48 : vector<8x32xf32>
    %66 = arith.mulf %61, %63 : vector<8x32xf32>
    %67 = arith.addf %65, %66 : vector<8x32xf32>
    %68 = math.tanh %67 : vector<8x32xf32>
    %69 = arith.mulf %64, %68 : vector<8x32xf32>
    %70 = vector.extract_strided_slice %9 {offsets = [24, 0], sizes = [8, 128], strides = [1, 1]} : vector<64x128xf32> to vector<8x128xf32>
    %71 = arith.truncf %69 : vector<8x32xf32> to vector<8x32xbf16>
    %cst_11 = arith.constant dense<0.000000e+00> : vector<8x128xf32>
    %72 = tpu.matmul %71, %10, %cst_11 {dimension_numbers = #tpu.dot_dimension_numbers<[1], [0], [0], [1], [0, 0, 1, 1], [], []>} : vector<8x32xbf16>, vector<32x128xbf16>, vector<8x128xf32> -> vector<8x128xf32>
    %73 = arith.addf %70, %72 : vector<8x128xf32>
    %74 = arith.negf %73 : vector<8x128xf32>
    %75 = math.exp %74 : vector<8x128xf32>
    %cst_12 = arith.constant 1.000000e+00 : f32
    %76 = vector.broadcast %cst_12 : f32 to vector<8x128xf32>
    %77 = arith.addf %76, %75 : vector<8x128xf32>
    %78 = arith.divf %76, %77 : vector<8x128xf32>
    %79 = math.tanh %73 : vector<8x128xf32>
    %80 = vector.extract_strided_slice %78 {offsets = [0, 0], sizes = [8, 32], strides = [1, 1]} : vector<8x128xf32> to vector<8x32xf32>
    %81 = vector.extract_strided_slice %78 {offsets = [0, 32], sizes = [8, 32], strides = [1, 1]} : vector<8x128xf32> to vector<8x32xf32>
    %82 = vector.extract_strided_slice %79 {offsets = [0, 64], sizes = [8, 32], strides = [1, 1]} : vector<8x128xf32> to vector<8x32xf32>
    %83 = vector.extract_strided_slice %78 {offsets = [0, 96], sizes = [8, 32], strides = [1, 1]} : vector<8x128xf32> to vector<8x32xf32>
    %84 = arith.mulf %81, %67 : vector<8x32xf32>
    %85 = arith.mulf %80, %82 : vector<8x32xf32>
    %86 = arith.addf %84, %85 : vector<8x32xf32>
    %87 = math.tanh %86 : vector<8x32xf32>
    %88 = arith.mulf %83, %87 : vector<8x32xf32>
    %89 = vector.extract_strided_slice %9 {offsets = [32, 0], sizes = [8, 128], strides = [1, 1]} : vector<64x128xf32> to vector<8x128xf32>
    %90 = arith.truncf %88 : vector<8x32xf32> to vector<8x32xbf16>
    %cst_13 = arith.constant dense<0.000000e+00> : vector<8x128xf32>
    %91 = tpu.matmul %90, %10, %cst_13 {dimension_numbers = #tpu.dot_dimension_numbers<[1], [0], [0], [1], [0, 0, 1, 1], [], []>} : vector<8x32xbf16>, vector<32x128xbf16>, vector<8x128xf32> -> vector<8x128xf32>
    %92 = arith.addf %89, %91 : vector<8x128xf32>
    %93 = arith.negf %92 : vector<8x128xf32>
    %94 = math.exp %93 : vector<8x128xf32>
    %cst_14 = arith.constant 1.000000e+00 : f32
    %95 = vector.broadcast %cst_14 : f32 to vector<8x128xf32>
    %96 = arith.addf %95, %94 : vector<8x128xf32>
    %97 = arith.divf %95, %96 : vector<8x128xf32>
    %98 = math.tanh %92 : vector<8x128xf32>
    %99 = vector.extract_strided_slice %97 {offsets = [0, 0], sizes = [8, 32], strides = [1, 1]} : vector<8x128xf32> to vector<8x32xf32>
    %100 = vector.extract_strided_slice %97 {offsets = [0, 32], sizes = [8, 32], strides = [1, 1]} : vector<8x128xf32> to vector<8x32xf32>
    %101 = vector.extract_strided_slice %98 {offsets = [0, 64], sizes = [8, 32], strides = [1, 1]} : vector<8x128xf32> to vector<8x32xf32>
    %102 = vector.extract_strided_slice %97 {offsets = [0, 96], sizes = [8, 32], strides = [1, 1]} : vector<8x128xf32> to vector<8x32xf32>
    %103 = arith.mulf %100, %86 : vector<8x32xf32>
    %104 = arith.mulf %99, %101 : vector<8x32xf32>
    %105 = arith.addf %103, %104 : vector<8x32xf32>
    %106 = math.tanh %105 : vector<8x32xf32>
    %107 = arith.mulf %102, %106 : vector<8x32xf32>
    %108 = vector.extract_strided_slice %9 {offsets = [40, 0], sizes = [8, 128], strides = [1, 1]} : vector<64x128xf32> to vector<8x128xf32>
    %109 = arith.truncf %107 : vector<8x32xf32> to vector<8x32xbf16>
    %cst_15 = arith.constant dense<0.000000e+00> : vector<8x128xf32>
    %110 = tpu.matmul %109, %10, %cst_15 {dimension_numbers = #tpu.dot_dimension_numbers<[1], [0], [0], [1], [0, 0, 1, 1], [], []>} : vector<8x32xbf16>, vector<32x128xbf16>, vector<8x128xf32> -> vector<8x128xf32>
    %111 = arith.addf %108, %110 : vector<8x128xf32>
    %112 = arith.negf %111 : vector<8x128xf32>
    %113 = math.exp %112 : vector<8x128xf32>
    %cst_16 = arith.constant 1.000000e+00 : f32
    %114 = vector.broadcast %cst_16 : f32 to vector<8x128xf32>
    %115 = arith.addf %114, %113 : vector<8x128xf32>
    %116 = arith.divf %114, %115 : vector<8x128xf32>
    %117 = math.tanh %111 : vector<8x128xf32>
    %118 = vector.extract_strided_slice %116 {offsets = [0, 0], sizes = [8, 32], strides = [1, 1]} : vector<8x128xf32> to vector<8x32xf32>
    %119 = vector.extract_strided_slice %116 {offsets = [0, 32], sizes = [8, 32], strides = [1, 1]} : vector<8x128xf32> to vector<8x32xf32>
    %120 = vector.extract_strided_slice %117 {offsets = [0, 64], sizes = [8, 32], strides = [1, 1]} : vector<8x128xf32> to vector<8x32xf32>
    %121 = vector.extract_strided_slice %116 {offsets = [0, 96], sizes = [8, 32], strides = [1, 1]} : vector<8x128xf32> to vector<8x32xf32>
    %122 = arith.mulf %119, %105 : vector<8x32xf32>
    %123 = arith.mulf %118, %120 : vector<8x32xf32>
    %124 = arith.addf %122, %123 : vector<8x32xf32>
    %125 = math.tanh %124 : vector<8x32xf32>
    %126 = arith.mulf %121, %125 : vector<8x32xf32>
    %127 = vector.extract_strided_slice %9 {offsets = [48, 0], sizes = [8, 128], strides = [1, 1]} : vector<64x128xf32> to vector<8x128xf32>
    %128 = arith.truncf %126 : vector<8x32xf32> to vector<8x32xbf16>
    %cst_17 = arith.constant dense<0.000000e+00> : vector<8x128xf32>
    %129 = tpu.matmul %128, %10, %cst_17 {dimension_numbers = #tpu.dot_dimension_numbers<[1], [0], [0], [1], [0, 0, 1, 1], [], []>} : vector<8x32xbf16>, vector<32x128xbf16>, vector<8x128xf32> -> vector<8x128xf32>
    %130 = arith.addf %127, %129 : vector<8x128xf32>
    %131 = arith.negf %130 : vector<8x128xf32>
    %132 = math.exp %131 : vector<8x128xf32>
    %cst_18 = arith.constant 1.000000e+00 : f32
    %133 = vector.broadcast %cst_18 : f32 to vector<8x128xf32>
    %134 = arith.addf %133, %132 : vector<8x128xf32>
    %135 = arith.divf %133, %134 : vector<8x128xf32>
    %136 = math.tanh %130 : vector<8x128xf32>
    %137 = vector.extract_strided_slice %135 {offsets = [0, 0], sizes = [8, 32], strides = [1, 1]} : vector<8x128xf32> to vector<8x32xf32>
    %138 = vector.extract_strided_slice %135 {offsets = [0, 32], sizes = [8, 32], strides = [1, 1]} : vector<8x128xf32> to vector<8x32xf32>
    %139 = vector.extract_strided_slice %136 {offsets = [0, 64], sizes = [8, 32], strides = [1, 1]} : vector<8x128xf32> to vector<8x32xf32>
    %140 = vector.extract_strided_slice %135 {offsets = [0, 96], sizes = [8, 32], strides = [1, 1]} : vector<8x128xf32> to vector<8x32xf32>
    %141 = arith.mulf %138, %124 : vector<8x32xf32>
    %142 = arith.mulf %137, %139 : vector<8x32xf32>
    %143 = arith.addf %141, %142 : vector<8x32xf32>
    %144 = math.tanh %143 : vector<8x32xf32>
    %145 = arith.mulf %140, %144 : vector<8x32xf32>
    %146 = vector.extract_strided_slice %9 {offsets = [56, 0], sizes = [8, 128], strides = [1, 1]} : vector<64x128xf32> to vector<8x128xf32>
    %147 = arith.truncf %145 : vector<8x32xf32> to vector<8x32xbf16>
    %cst_19 = arith.constant dense<0.000000e+00> : vector<8x128xf32>
    %148 = tpu.matmul %147, %10, %cst_19 {dimension_numbers = #tpu.dot_dimension_numbers<[1], [0], [0], [1], [0, 0, 1, 1], [], []>} : vector<8x32xbf16>, vector<32x128xbf16>, vector<8x128xf32> -> vector<8x128xf32>
    %149 = arith.addf %146, %148 : vector<8x128xf32>
    %150 = arith.negf %149 : vector<8x128xf32>
    %151 = math.exp %150 : vector<8x128xf32>
    %cst_20 = arith.constant 1.000000e+00 : f32
    %152 = vector.broadcast %cst_20 : f32 to vector<8x128xf32>
    %153 = arith.addf %152, %151 : vector<8x128xf32>
    %154 = arith.divf %152, %153 : vector<8x128xf32>
    %155 = math.tanh %149 : vector<8x128xf32>
    %156 = vector.extract_strided_slice %154 {offsets = [0, 0], sizes = [8, 32], strides = [1, 1]} : vector<8x128xf32> to vector<8x32xf32>
    %157 = vector.extract_strided_slice %154 {offsets = [0, 32], sizes = [8, 32], strides = [1, 1]} : vector<8x128xf32> to vector<8x32xf32>
    %158 = vector.extract_strided_slice %155 {offsets = [0, 64], sizes = [8, 32], strides = [1, 1]} : vector<8x128xf32> to vector<8x32xf32>
    %159 = vector.extract_strided_slice %154 {offsets = [0, 96], sizes = [8, 32], strides = [1, 1]} : vector<8x128xf32> to vector<8x32xf32>
    %160 = arith.mulf %157, %143 : vector<8x32xf32>
    %161 = arith.mulf %156, %158 : vector<8x32xf32>
    %162 = arith.addf %160, %161 : vector<8x32xf32>
    %163 = math.tanh %162 : vector<8x32xf32>
    %164 = arith.mulf %159, %163 : vector<8x32xf32>
    %165 = vector.broadcast %4 : vector<1x32xf32> to vector<8x32xf32>
    %166 = arith.mulf %164, %165 : vector<8x32xf32>
    %cst_21 = arith.constant dense<0.000000e+00> : vector<8xf32>
    %167 = vector.multi_reduction <add>, %166, %cst_21 [1] : vector<8x32xf32> to vector<8xf32>
    %168 = vector.shape_cast %167 : vector<8xf32> to vector<8x1xf32>
    %169 = vector.broadcast %5 : vector<1x1xf32> to vector<8x1xf32>
    %170 = arith.addf %168, %169 : vector<8x1xf32>
    %c0_22 = arith.constant 0 : index
    %c0_23 = arith.constant 0 : index
    %171 = vector.load %arg3[%c0_22, %c0_23] : memref<8x1xf32, #tpu.memory_space<vmem>>, vector<8x1xf32>
    tpu.vector_store %arg3[%c0_22, %c0_23], %170 {strides = array<i32>} : memref<8x1xf32, #tpu.memory_space<vmem>>, vector<8x1xf32>,
    return
  }
  func.func @transform_0(%arg0: i32) -> (i32, i32) {
    %c0_i32 = arith.constant 0 : i32
    %c0_i32_0 = arith.constant 0 : i32
    %c0_i32_1 = arith.constant 0 : i32
    return %c0_i32, %c0_i32_0 : i32, i32
  }
  func.func @transform_1(%arg0: i32) -> (i32, i32) {
    %c0_i32 = arith.constant 0 : i32
    %c0_i32_0 = arith.constant 0 : i32
    %c0_i32_1 = arith.constant 0 : i32
    return %c0_i32, %c0_i32_0 : i32, i32
  }
  func.func @transform_2(%arg0: i32) -> (i32, i32) {
    %c0_i32 = arith.constant 0 : i32
    %c0_i32_0 = arith.constant 0 : i32
    %c0_i32_1 = arith.constant 0 : i32
    return %c0_i32, %c0_i32_0 : i32, i32
  }
}

</mosaic_0001>

<llo_original>
// kernel: tpu_custom_call.1
$region0: #{tpu_custom_call.1}
  #allocation0 [shape = 'u32[]', space=smem, size = 0x4, offset = 0x4, fixed_abs, tag = 'smem constant byte address 0x4 - core index']
  #allocation1 [shape = 'u32[144,128]{1,0:T(1,128)}', space=vmem, size = 0x12000, scoped, tag = 'internal scratch']
  %s0 = inlined_call_operand.vmem [shape: f32[64,4], index: 0, kind: input, shape index: {}]
  %s1 = inlined_call_operand.vmem [shape: f32[40,128], index: 1, kind: input, shape index: {}]
  %s2 = inlined_call_operand.vmem [shape: f32[8,1], index: 2, kind: output, shape index: {}]
  %s3 = sld [smem:[#allocation0]]
  $region18: #{tpu_custom_call.1} parent=0
    _
  %s5 = ssub.s32 1, %s3
  %s6 = scalar_select 0, %s5, %s3
  // Predicated region
  $region2: #{tpu_custom_call.1} parent=0 // pred_check
    _
  $region3: #{tpu_custom_call.1} parent=0 // pred_check_branch
    %8 = sbr.rel (0) target = $region5
  $region4: #{tpu_custom_call.1} parent=0 // pred_region
    _
  $region5: #{tpu_custom_call.1} parent=0 // pred_fallthru
    _
  // Predicated region
  $region6: #{tpu_custom_call.1} parent=0 // pred_check
    _
  $region7: #{tpu_custom_call.1} parent=0 // pred_check_branch
    %10 = sbr.rel (0) target = $region9
  $region8: #{tpu_custom_call.1} parent=0 // pred_region
    _
  $region9: #{tpu_custom_call.1} parent=0 // pred_fallthru
    _
  %v12 = vld [vmem:[%s1] sm:$0xff]
  %v13 = vld [vmem:[%s1 + $0x8] sm:$0xff]
  %v14 = vld [vmem:[%s1 + $0x10] sm:$0xff]
  %v15 = vld [vmem:[%s1 + $0x18] sm:$0xff]
  %v16 = vld [vmem:[%s1 + $0x20] sm:$0xff]
  %v17 = vld [vmem:[%s0] sm:$0xff]
  %v18 = vld [vmem:[%s0 + $0x8] sm:$0xff]
  %v19 = vld [vmem:[%s0 + $0x10] sm:$0xff]
  %v20 = vld [vmem:[%s0 + $0x18] sm:$0xff]
  %v21 = vld [vmem:[%s0 + $0x20] sm:$0xff]
  %v22 = vld [vmem:[%s0 + $0x28] sm:$0xff]
  %v23 = vld [vmem:[%s0 + $0x30] sm:$0xff]
  %v24 = vld [vmem:[%s0 + $0x38] sm:$0xff]
  %v25 = vlaneseq
  %v26 = vshrl.u32 %v25, 7
  %v27 = vsub.s32 4, %v26
  %v28 = vrot.slane %v16, %v27
  %vm29 = vcmask 31744
  %v31 = vsel %vm29, %v17, 0
  %v34 = vsel %vm29, %v18, 0
  %v37 = vsel %vm29, %v19, 0
  %v40 = vsel %vm29, %v20, 0
  %v43 = vsel %vm29, %v21, 0
  %v46 = vsel %vm29, %v22, 0
  %v49 = vsel %vm29, %v23, 0
  %v52 = vsel %vm29, %v24, 0
  %vm54 = vcmask 1043456
  %v56 = vsel %vm54, %v16, 0
  %58 = vmatprep.subr.mxu0 0.0
  %59 = vmatpush1.msra.mxu0 %v56
  %60 = vmatprep.subr.mxu0 0.0
  %61 = vmatpush1.msra.mxu0 0.0
  %62 = vmatprep.subr.mxu0 0.0
  %63 = vmatpush1.msra.mxu0 0.0
  %64 = vmatprep.subr.mxu0 0.0
  %65 = vmatpush1.msra.mxu0 0.0
  %66 = vmatprep.subr.mxu0 0.0
  %67 = vmatpush1.msra.mxu0 0.0
  %68 = vmatprep.subr.mxu0 0.0
  %69 = vmatpush1.msra.mxu0 0.0
  %70 = vmatprep.subr.mxu0 0.0
  %71 = vmatpush1.msra.mxu0 0.0
  %72 = vmatprep.subr.mxu0 0.0
  %73 = vmatpush1.msra.mxu0 0.0
  %74 = vmatprep.subr.mxu0 0.0
  %75 = vmatpush1.msra.mxu0 0.0
  %76 = vmatprep.subr.mxu0 0.0
  %77 = vmatpush1.msra.mxu0 0.0
  %78 = vmatprep.subr.mxu0 0.0
  %79 = vmatpush1.msra.mxu0 0.0
  %80 = vmatprep.subr.mxu0 0.0
  %81 = vmatpush1.msra.mxu0 0.0
  %82 = vmatprep.subr.mxu0 0.0
  %83 = vmatpush1.msra.mxu0 0.0
  %84 = vmatprep.subr.mxu0 0.0
  %85 = vmatpush1.msra.mxu0 0.0
  %86 = vmatprep.subr.mxu0 0.0
  %87 = vmatpush1.msra.mxu0 0.0
  %88 = vmatprep.subr.mxu0 0.0
  %89 = vmatpush1.msra.mxu0 0.0
  %90 = vmatprep.subr.mxu0 0.0
  %91 = vmatpush1.msra.mxu0 0.0
  %92 = vmatprep.subr.mxu0 0.0
  %93 = vmatpush1.msra.mxu0 0.0
  %94 = vmatprep.subr.mxu0 0.0
  %95 = vmatpush1.msra.mxu0 0.0
  %96 = vmatprep.subr.mxu0 0.0
  %97 = vmatpush1.msra.mxu0 0.0
  %98 = vmatprep.subr.mxu0 0.0
  %99 = vmatpush1.msra.mxu0 0.0
  %100 = vmatprep.subr.mxu0 0.0
  %101 = vmatpush1.msra.mxu0 0.0
  %102 = vmatprep.subr.mxu0 0.0
  %103 = vmatpush1.msra.mxu0 0.0
  %104 = vmatprep.subr.mxu0 0.0
  %105 = vmatpush1.msra.mxu0 0.0
  %106 = vmatprep.subr.mxu0 0.0
  %107 = vmatpush1.msra.mxu0 0.0
  %108 = vmatprep.subr.mxu0 0.0
  %109 = vmatpush1.msra.mxu0 0.0
  %110 = vmatprep.subr.mxu0 0.0
  %111 = vmatpush1.msra.mxu0 0.0
  %112 = vmatprep.subr.mxu0 0.0
  %113 = vmatpush1.msra.mxu0 0.0
  %114 = vmatprep.subr.mxu0 0.0
  %115 = vmatpush1.msra.mxu0 0.0
  %116 = vmatprep.subr.mxu0 0.0
  %117 = vmatpush1.msra.mxu0 0.0
  %118 = vmatprep.subr.mxu0 0.0
  %119 = vmatpush1.msra.mxu0 0.0
  %120 = vmatprep.subr.mxu0 0.0
  %121 = vmatpush1.msra.mxu0 0.0
  %122 = vmatprep.mubr.f32.mxu0 0.0
  %123 = vmatmul.mubr.f32.gmra.mrb[0].mxu0 %v31
  %v124 = vpop.f32.mrb[0].mxu0
  %v125 = vadd.f32 %v28, %v124
  %v126 = vpop.f32.mrb[0].mxu0
  %127 = vmatprep.mubr.f32.mxu0 0.0
  %128 = vmatmul.mubr.f32.gmra.mrb[0].mxu0 %v34
  %v129 = vpop.f32.mrb[0].mxu0
  %v130 = vadd.f32 %v28, %v129
  %v131 = vpop.f32.mrb[0].mxu0
  %132 = vmatprep.mubr.f32.mxu0 0.0
  %133 = vmatmul.mubr.f32.gmra.mrb[0].mxu0 %v37
  %v134 = vpop.f32.mrb[0].mxu0
  %v135 = vadd.f32 %v28, %v134
  %v136 = vpop.f32.mrb[0].mxu0
  %137 = vmatprep.mubr.f32.mxu0 0.0
  %138 = vmatmul.mubr.f32.gmra.mrb[0].mxu0 %v40
  %v139 = vpop.f32.mrb[0].mxu0
  %v140 = vadd.f32 %v28, %v139
  %v141 = vpop.f32.mrb[0].mxu0
  %142 = vmatprep.mubr.f32.mxu0 0.0
  %143 = vmatmul.mubr.f32.gmra.mrb[0].mxu0 %v43
  %v144 = vpop.f32.mrb[0].mxu0
  %v145 = vadd.f32 %v28, %v144
  %v146 = vpop.f32.mrb[0].mxu0
  %147 = vmatprep.mubr.f32.mxu0 0.0
  %148 = vmatmul.mubr.f32.gmra.mrb[0].mxu0 %v46
  %v149 = vpop.f32.mrb[0].mxu0
  %v150 = vadd.f32 %v28, %v149
  %v151 = vpop.f32.mrb[0].mxu0
  %152 = vmatprep.mubr.f32.mxu0 0.0
  %153 = vmatmul.mubr.f32.gmra.mrb[0].mxu0 %v49
  %v154 = vpop.f32.mrb[0].mxu0
  %v155 = vadd.f32 %v28, %v154
  %v156 = vpop.f32.mrb[0].mxu0
  %157 = vmatprep.mubr.f32.mxu0 0.0
  %158 = vmatmul.mubr.f32.gmra.mrb[0].mxu0 %v52
  %v159 = vpop.f32.mrb[0].mxu0
  %v160 = vadd.f32 %v28, %v159
  %v161 = vpop.f32.mrb[0].mxu0
  %162 = vdwg.mxu0
  %v163 = vpack.c.bf16 %v13, %v12
  %v164 = vpack.c.bf16 %v15, %v14
  %vm165 = vcmask 261120
  %v167 = vsel %vm165, 0, 0
  %169 = vmatprep.subr.bf16.mxu0 0
  %170 = vmatpush1.bf16.msra.mxu0 %v163
  %171 = vmatprep.subr.bf16.mxu0 0
  %172 = vmatpush1.bf16.msra.mxu0 %v164
  %173 = vmatprep.subr.bf16.mxu0 0
  %174 = vmatpush1.bf16.msra.mxu0 0
  %175 = vmatprep.subr.bf16.mxu0 0
  %176 = vmatpush1.bf16.msra.mxu0 0
  %177 = vmatprep.subr.bf16.mxu0 0
  %178 = vmatpush1.bf16.msra.mxu0 0
  %179 = vmatprep.subr.bf16.mxu0 0
  %180 = vmatpush1.bf16.msra.mxu0 0
  %181 = vmatprep.subr.bf16.mxu0 0
  %182 = vmatpush1.bf16.msra.mxu0 0
  %183 = vmatprep.subr.bf16.mxu0 0
  %184 = vmatpush1.bf16.msra.mxu0 0
  %185 = vmatprep.subr.bf16.mxu0 0
  %186 = vmatpush1.bf16.msra.mxu0 0
  %187 = vmatprep.subr.bf16.mxu0 0
  %188 = vmatpush1.bf16.msra.mxu0 0
  %189 = vmatprep.subr.bf16.mxu0 0
  %190 = vmatpush1.bf16.msra.mxu0 0
  %191 = vmatprep.subr.bf16.mxu0 0
  %192 = vmatpush1.bf16.msra.mxu0 0
  %193 = vmatprep.subr.bf16.mxu0 0
  %194 = vmatpush1.bf16.msra.mxu0 0
  %195 = vmatprep.subr.bf16.mxu0 0
  %196 = vmatpush1.bf16.msra.mxu0 0
  %197 = vmatprep.subr.bf16.mxu0 0
  %198 = vmatpush1.bf16.msra.mxu0 0
  %199 = vmatprep.subr.bf16.mxu0 0
  %200 = vmatpush1.bf16.msra.mxu0 0
  %201 = vmatprep.mubr.bf16.mxu0 0
  %202 = vmatmul.mubr.bf16.gmra.mrb[0].mxu0 %v167
  %v203 = vpop.f32.mrb[0].mxu0
  %v204 = vadd.f32 0.0, %v203
  %v205 = vpop.f32.mrb[0].mxu0
  %v206 = vpop.f32.mrb[0].mxu0
  %v207 = vpop.f32.mrb[0].mxu0
  %208 = vdwg.mxu0
  %v209 = vadd.f32 %v125, %v204
  %v210 = vxor.u32 %v209, 2147483648
  %v211 = vmul.f32 %v210, 1.442695
  %v212 = vpow.pop %v211
  %v213 = vadd.f32 %v212, 1.0
  %v214 = vrcp.pop %v213
  %v215 = vmul.f32 1.0, %v214
  %v216 = vtanh.pop %v209
  %v217 = vmul.f32 %v215, 0.0
  %219 = vrot.lane.b32.xlu0 %v216, 64
  %v220 = vpop.permute.xlu0 %219
  %v222 = vmul.f32 %v215, %v220
  %224 = vrot.lane.b32.xlu0 %v222, 32
  %v225 = vpop.permute.xlu0 %224
  %v227 = vadd.f32 %v217, %v225
  %v228 = vtanh.pop %v227
  %230 = vrot.lane.b32.xlu0 %v228, 64
  %v231 = vpop.permute.xlu0 %230
  %v233 = vmul.f32 %v215, %v231
  %v234 = vpack.c.bf16 %v233, %v233
  %236 = vrot.lane.b32.xlu0 %v234, 32
  %v237 = vpop.permute.xlu0 %236
  %v239 = vsel %vm165, %v237, 0
  %241 = vmatprep.subr.bf16.mxu0 0
  %242 = vmatpush1.bf16.msra.mxu0 %v163
  %243 = vmatprep.subr.bf16.mxu0 0
  %244 = vmatpush1.bf16.msra.mxu0 %v164
  %245 = vmatprep.subr.bf16.mxu0 0
  %246 = vmatpush1.bf16.msra.mxu0 0
  %247 = vmatprep.subr.bf16.mxu0 0
  %248 = vmatpush1.bf16.msra.mxu0 0
  %249 = vmatprep.subr.bf16.mxu0 0
  %250 = vmatpush1.bf16.msra.mxu0 0
  %251 = vmatprep.subr.bf16.mxu0 0
  %252 = vmatpush1.bf16.msra.mxu0 0
  %253 = vmatprep.subr.bf16.mxu0 0
  %254 = vmatpush1.bf16.msra.mxu0 0
  %255 = vmatprep.subr.bf16.mxu0 0
  %256 = vmatpush1.bf16.msra.mxu0 0
  %257 = vmatprep.subr.bf16.mxu0 0
  %258 = vmatpush1.bf16.msra.mxu0 0
  %259 = vmatprep.subr.bf16.mxu0 0
  %260 = vmatpush1.bf16.msra.mxu0 0
  %261 = vmatprep.subr.bf16.mxu0 0
  %262 = vmatpush1.bf16.msra.mxu0 0
  %263 = vmatprep.subr.bf16.mxu0 0
  %264 = vmatpush1.bf16.msra.mxu0 0
  %265 = vmatprep.subr.bf16.mxu0 0
  %266 = vmatpush1.bf16.msra.mxu0 0
  %267 = vmatprep.subr.bf16.mxu0 0
  %268 = vmatpush1.bf16.msra.mxu0 0
  %269 = vmatprep.subr.bf16.mxu0 0
  %270 = vmatpush1.bf16.msra.mxu0 0
  %271 = vmatprep.subr.bf16.mxu0 0
  %272 = vmatpush1.bf16.msra.mxu0 0
  %273 = vmatprep.mubr.bf16.mxu0 0
  %274 = vmatmul.mubr.bf16.gmra.mrb[0].mxu0 %v239
  %v275 = vpop.f32.mrb[0].mxu0
  %v276 = vadd.f32 0.0, %v275
  %v277 = vpop.f32.mrb[0].mxu0
  %v278 = vpop.f32.mrb[0].mxu0
  %v279 = vpop.f32.mrb[0].mxu0
  %280 = vdwg.mxu0
  %v281 = vadd.f32 %v130, %v276
  %v282 = vxor.u32 %v281, 2147483648
  %v283 = vmul.f32 %v282, 1.442695
  %v284 = vpow.pop %v283
  %v285 = vadd.f32 %v284, 1.0
  %v286 = vrcp.pop %v285
  %v287 = vmul.f32 1.0, %v286
  %v288 = vtanh.pop %v281
  %v289 = vmul.f32 %v287, %v227
  %291 = vrot.lane.b32.xlu0 %v288, 64
  %v292 = vpop.permute.xlu0 %291
  %v294 = vmul.f32 %v287, %v292
  %296 = vrot.lane.b32.xlu0 %v294, 32
  %v297 = vpop.permute.xlu0 %296
  %v299 = vadd.f32 %v289, %v297
  %v300 = vtanh.pop %v299
  %302 = vrot.lane.b32.xlu0 %v300, 64
  %v303 = vpop.permute.xlu0 %302
  %v305 = vmul.f32 %v287, %v303
  %v306 = vpack.c.bf16 %v305, %v305
  %308 = vrot.lane.b32.xlu0 %v306, 32
  %v309 = vpop.permute.xlu0 %308
  %v311 = vsel %vm165, %v309, 0
  %313 = vmatprep.subr.bf16.mxu0 0
  %314 = vmatpush1.bf16.msra.mxu0 %v163
  %315 = vmatprep.subr.bf16.mxu0 0
  %316 = vmatpush1.bf16.msra.mxu0 %v164
  %317 = vmatprep.subr.bf16.mxu0 0
  %318 = vmatpush1.bf16.msra.mxu0 0
  %319 = vmatprep.subr.bf16.mxu0 0
  %320 = vmatpush1.bf16.msra.mxu0 0
  %321 = vmatprep.subr.bf16.mxu0 0
  %322 = vmatpush1.bf16.msra.mxu0 0
  %323 = vmatprep.subr.bf16.mxu0 0
  %324 = vmatpush1.bf16.msra.mxu0 0
  %325 = vmatprep.subr.bf16.mxu0 0
  %326 = vmatpush1.bf16.msra.mxu0 0
  %327 = vmatprep.subr.bf16.mxu0 0
  %328 = vmatpush1.bf16.msra.mxu0 0
  %329 = vmatprep.subr.bf16.mxu0 0
  %330 = vmatpush1.bf16.msra.mxu0 0
  %331 = vmatprep.subr.bf16.mxu0 0
  %332 = vmatpush1.bf16.msra.mxu0 0
  %333 = vmatprep.subr.bf16.mxu0 0
  %334 = vmatpush1.bf16.msra.mxu0 0
  %335 = vmatprep.subr.bf16.mxu0 0
  %336 = vmatpush1.bf16.msra.mxu0 0
  %337 = vmatprep.subr.bf16.mxu0 0
  %338 = vmatpush1.bf16.msra.mxu0 0
  %339 = vmatprep.subr.bf16.mxu0 0
  %340 = vmatpush1.bf16.msra.mxu0 0
  %341 = vmatprep.subr.bf16.mxu0 0
  %342 = vmatpush1.bf16.msra.mxu0 0
  %343 = vmatprep.subr.bf16.mxu0 0
  %344 = vmatpush1.bf16.msra.mxu0 0
  %345 = vmatprep.mubr.bf16.mxu0 0
  %346 = vmatmul.mubr.bf16.gmra.mrb[0].mxu0 %v311
  %v347 = vpop.f32.mrb[0].mxu0
  %v348 = vadd.f32 0.0, %v347
  %v349 = vpop.f32.mrb[0].mxu0
  %v350 = vpop.f32.mrb[0].mxu0
  %v351 = vpop.f32.mrb[0].mxu0
  %352 = vdwg.mxu0
  %v353 = vadd.f32 %v135, %v348
  %v354 = vxor.u32 %v353, 2147483648
  %v355 = vmul.f32 %v354, 1.442695
  %v356 = vpow.pop %v355
  %v357 = vadd.f32 %v356, 1.0
  %v358 = vrcp.pop %v357
  %v359 = vmul.f32 1.0, %v358
  %v360 = vtanh.pop %v353
  %v361 = vmul.f32 %v359, %v299
  %363 = vrot.lane.b32.xlu0 %v360, 64
  %v364 = vpop.permute.xlu0 %363
  %v366 = vmul.f32 %v359, %v364
  %368 = vrot.lane.b32.xlu0 %v366, 32
  %v369 = vpop.permute.xlu0 %368
  %v371 = vadd.f32 %v361, %v369
  %v372 = vtanh.pop %v371
  %374 = vrot.lane.b32.xlu0 %v372, 64
  %v375 = vpop.permute.xlu0 %374
  %v377 = vmul.f32 %v359, %v375
  %v378 = vpack.c.bf16 %v377, %v377
  %380 = vrot.lane.b32.xlu0 %v378, 32
  %v381 = vpop.permute.xlu0 %380
  %v383 = vsel %vm165, %v381, 0
  %385 = vmatprep.subr.bf16.mxu0 0
  %386 = vmatpush1.bf16.msra.mxu0 %v163
  %387 = vmatprep.subr.bf16.mxu0 0
  %388 = vmatpush1.bf16.msra.mxu0 %v164
  %389 = vmatprep.subr.bf16.mxu0 0
  %390 = vmatpush1.bf16.msra.mxu0 0
  %391 = vmatprep.subr.bf16.mxu0 0
  %392 = vmatpush1.bf16.msra.mxu0 0
  %393 = vmatprep.subr.bf16.mxu0 0
  %394 = vmatpush1.bf16.msra.mxu0 0
  %395 = vmatprep.subr.bf16.mxu0 0
  %396 = vmatpush1.bf16.msra.mxu0 0
  %397 = vmatprep.subr.bf16.mxu0 0
  %398 = vmatpush1.bf16.msra.mxu0 0
  %399 = vmatprep.subr.bf16.mxu0 0
  %400 = vmatpush1.bf16.msra.mxu0 0
  %401 = vmatprep.subr.bf16.mxu0 0
  %402 = vmatpush1.bf16.msra.mxu0 0
  %403 = vmatprep.subr.bf16.mxu0 0
  %404 = vmatpush1.bf16.msra.mxu0 0
  %405 = vmatprep.subr.bf16.mxu0 0
  %406 = vmatpush1.bf16.msra.mxu0 0
  %407 = vmatprep.subr.bf16.mxu0 0
  %408 = vmatpush1.bf16.msra.mxu0 0
  %409 = vmatprep.subr.bf16.mxu0 0
  %410 = vmatpush1.bf16.msra.mxu0 0
  %411 = vmatprep.subr.bf16.mxu0 0
  %412 = vmatpush1.bf16.msra.mxu0 0
  %413 = vmatprep.subr.bf16.mxu0 0
  %414 = vmatpush1.bf16.msra.mxu0 0
  %415 = vmatprep.subr.bf16.mxu0 0
  %416 = vmatpush1.bf16.msra.mxu0 0
  %417 = vmatprep.mubr.bf16.mxu0 0
  %418 = vmatmul.mubr.bf16.gmra.mrb[0].mxu0 %v383
  %v419 = vpop.f32.mrb[0].mxu0
  %v420 = vadd.f32 0.0, %v419
  %v421 = vpop.f32.mrb[0].mxu0
  %v422 = vpop.f32.mrb[0].mxu0
  %v423 = vpop.f32.mrb[0].mxu0
  %424 = vdwg.mxu0
  %v425 = vadd.f32 %v140, %v420
  %v426 = vxor.u32 %v425, 2147483648
  %v427 = vmul.f32 %v426, 1.442695
  %v428 = vpow.pop %v427
  %v429 = vadd.f32 %v428, 1.0
  %v430 = vrcp.pop %v429
  %v431 = vmul.f32 1.0, %v430
  %v432 = vtanh.pop %v425
  %v433 = vmul.f32 %v431, %v371
  %435 = vrot.lane.b32.xlu0 %v432, 64
  %v436 = vpop.permute.xlu0 %435
  %v438 = vmul.f32 %v431, %v436
  %440 = vrot.lane.b32.xlu0 %v438, 32
  %v441 = vpop.permute.xlu0 %440
  %v443 = vadd.f32 %v433, %v441
  %v444 = vtanh.pop %v443
  %446 = vrot.lane.b32.xlu0 %v444, 64
  %v447 = vpop.permute.xlu0 %446
  %v449 = vmul.f32 %v431, %v447
  %v450 = vpack.c.bf16 %v449, %v449
  %452 = vrot.lane.b32.xlu0 %v450, 32
  %v453 = vpop.permute.xlu0 %452
  %v455 = vsel %vm165, %v453, 0
  %457 = vmatprep.subr.bf16.mxu0 0
  %458 = vmatpush1.bf16.msra.mxu0 %v163
  %459 = vmatprep.subr.bf16.mxu0 0
  %460 = vmatpush1.bf16.msra.mxu0 %v164
  %461 = vmatprep.subr.bf16.mxu0 0
  %462 = vmatpush1.bf16.msra.mxu0 0
  %463 = vmatprep.subr.bf16.mxu0 0
  %464 = vmatpush1.bf16.msra.mxu0 0
  %465 = vmatprep.subr.bf16.mxu0 0
  %466 = vmatpush1.bf16.msra.mxu0 0
  %467 = vmatprep.subr.bf16.mxu0 0
  %468 = vmatpush1.bf16.msra.mxu0 0
  %469 = vmatprep.subr.bf16.mxu0 0
  %470 = vmatpush1.bf16.msra.mxu0 0
  %471 = vmatprep.subr.bf16.mxu0 0
  %472 = vmatpush1.bf16.msra.mxu0 0
  %473 = vmatprep.subr.bf16.mxu0 0
  %474 = vmatpush1.bf16.msra.mxu0 0
  %475 = vmatprep.subr.bf16.mxu0 0
  %476 = vmatpush1.bf16.msra.mxu0 0
  %477 = vmatprep.subr.bf16.mxu0 0
  %478 = vmatpush1.bf16.msra.mxu0 0
  %479 = vmatprep.subr.bf16.mxu0 0
  %480 = vmatpush1.bf16.msra.mxu0 0
  %481 = vmatprep.subr.bf16.mxu0 0
  %482 = vmatpush1.bf16.msra.mxu0 0
  %483 = vmatprep.subr.bf16.mxu0 0
  %484 = vmatpush1.bf16.msra.mxu0 0
  %485 = vmatprep.subr.bf16.mxu0 0
  %486 = vmatpush1.bf16.msra.mxu0 0
  %487 = vmatprep.subr.bf16.mxu0 0
  %488 = vmatpush1.bf16.msra.mxu0 0
  %489 = vmatprep.mubr.bf16.mxu0 0
  %490 = vmatmul.mubr.bf16.gmra.mrb[0].mxu0 %v455
  %v491 = vpop.f32.mrb[0].mxu0
  %v492 = vadd.f32 0.0, %v491
  %v493 = vpop.f32.mrb[0].mxu0
  %v494 = vpop.f32.mrb[0].mxu0
  %v495 = vpop.f32.mrb[0].mxu0
  %496 = vdwg.mxu0
  %v497 = vadd.f32 %v145, %v492
  %v498 = vxor.u32 %v497, 2147483648
  %v499 = vmul.f32 %v498, 1.442695
  %v500 = vpow.pop %v499
  %v501 = vadd.f32 %v500, 1.0
  %v502 = vrcp.pop %v501
  %v503 = vmul.f32 1.0, %v502
  %v504 = vtanh.pop %v497
  %v505 = vmul.f32 %v503, %v443
  %507 = vrot.lane.b32.xlu0 %v504, 64
  %v508 = vpop.permute.xlu0 %507
  %v510 = vmul.f32 %v503, %v508
  %512 = vrot.lane.b32.xlu0 %v510, 32
  %v513 = vpop.permute.xlu0 %512
  %v515 = vadd.f32 %v505, %v513
  %v516 = vtanh.pop %v515
  %518 = vrot.lane.b32.xlu0 %v516, 64
  %v519 = vpop.permute.xlu0 %518
  %v521 = vmul.f32 %v503, %v519
  %v522 = vpack.c.bf16 %v521, %v521
  %524 = vrot.lane.b32.xlu0 %v522, 32
  %v525 = vpop.permute.xlu0 %524
  %v527 = vsel %vm165, %v525, 0
  %529 = vmatprep.subr.bf16.mxu0 0
  %530 = vmatpush1.bf16.msra.mxu0 %v163
  %531 = vmatprep.subr.bf16.mxu0 0
  %532 = vmatpush1.bf16.msra.mxu0 %v164
  %533 = vmatprep.subr.bf16.mxu0 0
  %534 = vmatpush1.bf16.msra.mxu0 0
  %535 = vmatprep.subr.bf16.mxu0 0
  %536 = vmatpush1.bf16.msra.mxu0 0
  %537 = vmatprep.subr.bf16.mxu0 0
  %538 = vmatpush1.bf16.msra.mxu0 0
  %539 = vmatprep.subr.bf16.mxu0 0
  %540 = vmatpush1.bf16.msra.mxu0 0
  %541 = vmatprep.subr.bf16.mxu0 0
  %542 = vmatpush1.bf16.msra.mxu0 0
  %543 = vmatprep.subr.bf16.mxu0 0
  %544 = vmatpush1.bf16.msra.mxu0 0
  %545 = vmatprep.subr.bf16.mxu0 0
  %546 = vmatpush1.bf16.msra.mxu0 0
  %547 = vmatprep.subr.bf16.mxu0 0
  %548 = vmatpush1.bf16.msra.mxu0 0
  %549 = vmatprep.subr.bf16.mxu0 0
  %550 = vmatpush1.bf16.msra.mxu0 0
  %551 = vmatprep.subr.bf16.mxu0 0
  %552 = vmatpush1.bf16.msra.mxu0 0
  %553 = vmatprep.subr.bf16.mxu0 0
  %554 = vmatpush1.bf16.msra.mxu0 0
  %555 = vmatprep.subr.bf16.mxu0 0
  %556 = vmatpush1.bf16.msra.mxu0 0
  %557 = vmatprep.subr.bf16.mxu0 0
  %558 = vmatpush1.bf16.msra.mxu0 0
  %559 = vmatprep.subr.bf16.mxu0 0
  %560 = vmatpush1.bf16.msra.mxu0 0
  %561 = vmatprep.mubr.bf16.mxu0 0
  %562 = vmatmul.mubr.bf16.gmra.mrb[0].mxu0 %v527
  %v563 = vpop.f32.mrb[0].mxu0
  %v564 = vadd.f32 0.0, %v563
  %v565 = vpop.f32.mrb[0].mxu0
  %v566 = vpop.f32.mrb[0].mxu0
  %v567 = vpop.f32.mrb[0].mxu0
  %568 = vdwg.mxu0
  %v569 = vadd.f32 %v150, %v564
  %v570 = vxor.u32 %v569, 2147483648
  %v571 = vmul.f32 %v570, 1.442695
  %v572 = vpow.pop %v571
  %v573 = vadd.f32 %v572, 1.0
  %v574 = vrcp.pop %v573
  %v575 = vmul.f32 1.0, %v574
  %v576 = vtanh.pop %v569
  %v577 = vmul.f32 %v575, %v515
  %579 = vrot.lane.b32.xlu0 %v576, 64
  %v580 = vpop.permute.xlu0 %579
  %v582 = vmul.f32 %v575, %v580
  %584 = vrot.lane.b32.xlu0 %v582, 32
  %v585 = vpop.permute.xlu0 %584
  %v587 = vadd.f32 %v577, %v585
  %v588 = vtanh.pop %v587
  %590 = vrot.lane.b32.xlu0 %v588, 64
  %v591 = vpop.permute.xlu0 %590
  %v593 = vmul.f32 %v575, %v591
  %v594 = vpack.c.bf16 %v593, %v593
  %596 = vrot.lane.b32.xlu0 %v594, 32
  %v597 = vpop.permute.xlu0 %596
  %v599 = vsel %vm165, %v597, 0
  %601 = vmatprep.subr.bf16.mxu0 0
  %602 = vmatpush1.bf16.msra.mxu0 %v163
  %603 = vmatprep.subr.bf16.mxu0 0
  %604 = vmatpush1.bf16.msra.mxu0 %v164
  %605 = vmatprep.subr.bf16.mxu0 0
  %606 = vmatpush1.bf16.msra.mxu0 0
  %607 = vmatprep.subr.bf16.mxu0 0
  %608 = vmatpush1.bf16.msra.mxu0 0
  %609 = vmatprep.subr.bf16.mxu0 0
  %610 = vmatpush1.bf16.msra.mxu0 0
  %611 = vmatprep.subr.bf16.mxu0 0
  %612 = vmatpush1.bf16.msra.mxu0 0
  %613 = vmatprep.subr.bf16.mxu0 0
  %614 = vmatpush1.bf16.msra.mxu0 0
  %615 = vmatprep.subr.bf16.mxu0 0
  %616 = vmatpush1.bf16.msra.mxu0 0
  %617 = vmatprep.subr.bf16.mxu0 0
  %618 = vmatpush1.bf16.msra.mxu0 0
  %619 = vmatprep.subr.bf16.mxu0 0
  %620 = vmatpush1.bf16.msra.mxu0 0
  %621 = vmatprep.subr.bf16.mxu0 0
  %622 = vmatpush1.bf16.msra.mxu0 0
  %623 = vmatprep.subr.bf16.mxu0 0
  %624 = vmatpush1.bf16.msra.mxu0 0
  %625 = vmatprep.subr.bf16.mxu0 0
  %626 = vmatpush1.bf16.msra.mxu0 0
  %627 = vmatprep.subr.bf16.mxu0 0
  %628 = vmatpush1.bf16.msra.mxu0 0
  %629 = vmatprep.subr.bf16.mxu0 0
  %630 = vmatpush1.bf16.msra.mxu0 0
  %631 = vmatprep.subr.bf16.mxu0 0
  %632 = vmatpush1.bf16.msra.mxu0 0
  %633 = vmatprep.mubr.bf16.mxu0 0
  %634 = vmatmul.mubr.bf16.gmra.mrb[0].mxu0 %v599
  %v635 = vpop.f32.mrb[0].mxu0
  %v636 = vadd.f32 0.0, %v635
  %v637 = vpop.f32.mrb[0].mxu0
  %v638 = vpop.f32.mrb[0].mxu0
  %v639 = vpop.f32.mrb[0].mxu0
  %640 = vdwg.mxu0
  %v641 = vadd.f32 %v155, %v636
  %v642 = vxor.u32 %v641, 2147483648
  %v643 = vmul.f32 %v642, 1.442695
  %v644 = vpow.pop %v643
  %v645 = vadd.f32 %v644, 1.0
  %v646 = vrcp.pop %v645
  %v647 = vmul.f32 1.0, %v646
  %v648 = vtanh.pop %v641
  %v649 = vmul.f32 %v647, %v587
  %651 = vrot.lane.b32.xlu0 %v648, 64
  %v652 = vpop.permute.xlu0 %651
  %v654 = vmul.f32 %v647, %v652
  %656 = vrot.lane.b32.xlu0 %v654, 32
  %v657 = vpop.permute.xlu0 %656
  %v659 = vadd.f32 %v649, %v657
  %v660 = vtanh.pop %v659
  %662 = vrot.lane.b32.xlu0 %v660, 64
  %v663 = vpop.permute.xlu0 %662
  %v665 = vmul.f32 %v647, %v663
  %v666 = vpack.c.bf16 %v665, %v665
  %668 = vrot.lane.b32.xlu0 %v666, 32
  %v669 = vpop.permute.xlu0 %668
  %v671 = vsel %vm165, %v669, 0
  %673 = vmatprep.subr.bf16.mxu0 0
  %674 = vmatpush1.bf16.msra.mxu0 %v163
  %675 = vmatprep.subr.bf16.mxu0 0
  %676 = vmatpush1.bf16.msra.mxu0 %v164
  %677 = vmatprep.subr.bf16.mxu0 0
  %678 = vmatpush1.bf16.msra.mxu0 0
  %679 = vmatprep.subr.bf16.mxu0 0
  %680 = vmatpush1.bf16.msra.mxu0 0
  %681 = vmatprep.subr.bf16.mxu0 0
  %682 = vmatpush1.bf16.msra.mxu0 0
  %683 = vmatprep.subr.bf16.mxu0 0
  %684 = vmatpush1.bf16.msra.mxu0 0
  %685 = vmatprep.subr.bf16.mxu0 0
  %686 = vmatpush1.bf16.msra.mxu0 0
  %687 = vmatprep.subr.bf16.mxu0 0
  %688 = vmatpush1.bf16.msra.mxu0 0
  %689 = vmatprep.subr.bf16.mxu0 0
  %690 = vmatpush1.bf16.msra.mxu0 0
  %691 = vmatprep.subr.bf16.mxu0 0
  %692 = vmatpush1.bf16.msra.mxu0 0
  %693 = vmatprep.subr.bf16.mxu0 0
  %694 = vmatpush1.bf16.msra.mxu0 0
  %695 = vmatprep.subr.bf16.mxu0 0
  %696 = vmatpush1.bf16.msra.mxu0 0
  %697 = vmatprep.subr.bf16.mxu0 0
  %698 = vmatpush1.bf16.msra.mxu0 0
  %699 = vmatprep.subr.bf16.mxu0 0
  %700 = vmatpush1.bf16.msra.mxu0 0
  %701 = vmatprep.subr.bf16.mxu0 0
  %702 = vmatpush1.bf16.msra.mxu0 0
  %703 = vmatprep.subr.bf16.mxu0 0
  %704 = vmatpush1.bf16.msra.mxu0 0
  %705 = vmatprep.mubr.bf16.mxu0 0
  %706 = vmatmul.mubr.bf16.gmra.mrb[0].mxu0 %v671
  %v707 = vpop.f32.mrb[0].mxu0
  %v708 = vadd.f32 0.0, %v707
  %v709 = vpop.f32.mrb[0].mxu0
  %v710 = vpop.f32.mrb[0].mxu0
  %v711 = vpop.f32.mrb[0].mxu0
  %712 = vdwg.mxu0
  %v713 = vadd.f32 %v160, %v708
  %v714 = vxor.u32 %v713, 2147483648
  %v715 = vmul.f32 %v714, 1.442695
  %v716 = vpow.pop %v715
  %v717 = vadd.f32 %v716, 1.0
  %v718 = vrcp.pop %v717
  %v719 = vmul.f32 1.0, %v718
  %v720 = vtanh.pop %v713
  %v721 = vmul.f32 %v719, %v659
  %723 = vrot.lane.b32.xlu0 %v720, 64
  %v724 = vpop.permute.xlu0 %723
  %v726 = vmul.f32 %v719, %v724
  %728 = vrot.lane.b32.xlu0 %v726, 32
  %v729 = vpop.permute.xlu0 %728
  %v731 = vadd.f32 %v721, %v729
  %v732 = vtanh.pop %v731
  %734 = vrot.lane.b32.xlu0 %v732, 64
  %v735 = vpop.permute.xlu0 %734
  %v737 = vmul.f32 %v719, %v735
  %v738 = vlaneseq
  %v739 = vshrl.u32 %v738, 7
  %v740 = vsub.s32 5, %v739
  %v741 = vrot.slane %v16, %v740
  %743 = vrot.lane.b32.xlu0 %v741, 96
  %v744 = vpop.permute.xlu0 %743
  %v746 = vmul.f32 %v737, %v744
  %748 = vrot.lane.b32.xlu0 %v746, 32
  %v749 = vpop.permute.xlu0 %748
  %v751 = vsel %vm165, %v749, 0.0
  %752 = vadd.xlane.f32.xlu0 %v751
  %v753 = vpop.xlane.xlu0 %752
  %v754 = vlaneseq
  %v755 = vshrl.u32 %v754, 7
  %v756 = vsub.s32 6, %v755
  %v757 = vrot.slane %v16, %v756
  %v758 = vadd.f32 %v753, %v757
  %vm759 = vcmask 7168
  %760 = vst.msk [vmem:[%s2] sm:$0xff] %vm759, %v758
  // Predicated region
  $region10: #{tpu_custom_call.1} parent=0 // pred_check
    _
  $region11: #{tpu_custom_call.1} parent=0 // pred_check_branch
    %762 = sbr.rel (0) target = $region13
  $region12: #{tpu_custom_call.1} parent=0 // pred_region
    _
  $region13: #{tpu_custom_call.1} parent=0 // pred_fallthru
    _
  // Predicated region
  $region14: #{tpu_custom_call.1} parent=0 // pred_check
    _
  $region15: #{tpu_custom_call.1} parent=0 // pred_check_branch
    %764 = sbr.rel (0) target = $region17
  $region16: #{tpu_custom_call.1} parent=0 // pred_region
    _
  $region17: #{tpu_custom_call.1} parent=0 // pred_fallthru
    _

</llo_original>
